<compile_context>
chip_gen: v7x
topology: tpu7x:2x2x1
jax: 0.10.0
libtpu: 0.0.40
codegen_flags: <defaults>
</compile_context>

<pallas_src>
import functools

import jax
import jax.numpy as jnp
from jax.experimental import pallas as pl
from jax.experimental.pallas import tpu as pltpu


def _pick_tile(dim: int, unit: int, cap: int) -> int:
    """Largest multiple of `unit` dividing `dim` with value <= cap; falls back to the
    smallest unit-multiple divisor, then to the full dim (allowed by Pallas)."""
    best = None
    t = unit
    while t <= min(dim, cap):
        if dim % t == 0:
            best = t
        t += unit
    if best is not None:
        return best
    t = unit
    while t <= dim:
        if dim % t == 0:
            return t
        t += unit
    return dim


def _stretch2d_kernel(*refs, x_scale, y_scale, cw, n_wchunks, exact_split, out_dtype):
    # refs: (x_ref[, rw_ref], o_ref)
    #   x_ref : (1, 1, TILE_H, TILE_W)
    #   rw_ref: (CW, CW * x_scale)  bf16 one-hot column-expansion matrix (resident)
    #   o_ref : (1, 1, TILE_H, y_scale, TILE_W * x_scale)   if y_scale > 1
    #           (1, 1, TILE_H,           TILE_W * x_scale)  if y_scale == 1
    if x_scale > 1:
        x_ref, rw_ref, o_ref = refs
    else:
        x_ref, o_ref = refs

    tile_h = x_ref.shape[2]
    owc = cw * x_scale  # output lane width produced per chunk

    for wi in range(n_wchunks):  # static unrolled loop over 128-column input chunks
        xc = x_ref[0, 0, :, wi * cw:(wi + 1) * cw]          # (TILE_H, CW)

        if x_scale > 1:
            rw = rw_ref[...]                                  # (CW, CW*x_scale) bf16
            if exact_split:
                # Exact copy for f32/f16: 3-way bf16 split, each term is exactly
                # bf16-representable and the one-hot matmul is exact per term.
                xf = xc.astype(jnp.float32)
                x1 = xf.astype(jnp.bfloat16)
                r1 = xf - x1.astype(jnp.float32)
                x2 = r1.astype(jnp.bfloat16)
                x3 = (r1 - x2.astype(jnp.float32)).astype(jnp.bfloat16)
                yc = (jnp.dot(x1, rw, preferred_element_type=jnp.float32)
                      + jnp.dot(x2, rw, preferred_element_type=jnp.float32)) \
                     + jnp.dot(x3, rw, preferred_element_type=jnp.float32)
            else:
                # bf16 input: single native MXU pass, exact.
                yc = jnp.dot(xc, rw, preferred_element_type=jnp.float32)
            yc = yc.astype(out_dtype)                         # (TILE_H, CW*x_scale)
        else:
            yc = xc                                           # pure copy along W

        w0 = wi * owc
        if y_scale > 1:
            # Sublane broadcast handles the H repeat; reshape outside is free.
            o_ref[0, 0, :, :, w0:w0 + owc] = jnp.broadcast_to(
                yc[:, None, :], (tile_h, y_scale, owc))
        else:
            o_ref[0, 0, :, w0:w0 + owc] = yc


def stretch2d(x, *, x_scale: int, y_scale: int):
    assert x.ndim == 4, "Stretch2d expects (B, C, H, W)"
    if x_scale == 1 and y_scale == 1:
        return x
    if not jnp.issubdtype(x.dtype, jnp.floating):
        # TODO(synk): integer dtypes would need a non-MXU exact expansion path.
        raise NotImplementedError("stretch2d Pallas kernel supports floating dtypes")

    B, C, H, W = x.shape
    OH, OW = H * y_scale, W * x_scale
    itemsize = jnp.dtype(x.dtype).itemsize

    # W tile: lane-dense (multiple of 128) when possible, bounded so the output
    # lane width stays moderate; else the full (small) width.
    cap_w = max(128, 2048 // max(x_scale, 1))
    TILE_W = _pick_tile(W, 128, cap_w)
    OWt = TILE_W * x_scale
    cw = 128 if TILE_W % 128 == 0 else TILE_W    # MXU contraction chunk
    n_wchunks = TILE_W // cw

    # H tile: multiple of 8 (or full H), bounded so the (sublane-padded) output
    # block stays around <= 4 MiB.
    sub = y_scale if y_scale == 1 else max(y_scale, 8)
    row_bytes = max(1, OWt * itemsize * sub)
    cap_h = max(8, min(256, (4 << 20) // row_bytes))
    TILE_H = _pick_tile(H, 8, cap_h)

    grid = (B, C, H // TILE_H, W // TILE_W)

    exact_split = (x.dtype != jnp.bfloat16)
    kernel = functools.partial(
        _stretch2d_kernel, x_scale=x_scale, y_scale=y_scale, cw=cw,
        n_wchunks=n_wchunks, exact_split=exact_split, out_dtype=x.dtype)

    in_specs = [pl.BlockSpec((1, 1, TILE_H, TILE_W), lambda b, c, i, j: (b, c, i, j))]
    args = [x]
    if x_scale > 1:
        # Exact 0/1 expansion matrix: rw[j, j*x_scale + q] = 1. Resident in VMEM.
        rw = jnp.repeat(jnp.eye(cw, dtype=jnp.bfloat16), x_scale, axis=1)
        in_specs.append(pl.BlockSpec((cw, cw * x_scale), lambda b, c, i, j: (0, 0)))
        args.append(rw)

    if y_scale > 1:
        out_shape = jax.ShapeDtypeStruct((B, C, H, y_scale, OW), x.dtype)
        out_spec = pl.BlockSpec((1, 1, TILE_H, y_scale, OWt),
                                lambda b, c, i, j: (b, c, i, 0, j))
    else:
        out_shape = jax.ShapeDtypeStruct((B, C, OH, OW), x.dtype)
        out_spec = pl.BlockSpec((1, 1, TILE_H, OWt), lambda b, c, i, j: (b, c, i, j))

    # Advisory cost hint for XLA scheduling around the custom call.
    steps = B * C * (H // TILE_H) * (W // TILE_W)
    passes = 3 if exact_split else 1
    flops = 0
    if x_scale > 1:
        flops = steps * n_wchunks * 2 * TILE_H * cw * (cw * x_scale) * passes
    bytes_accessed = x.size * itemsize + B * C * OH * OW * itemsize
    if x_scale > 1:
        bytes_accessed += cw * (cw * x_scale) * 2

    out = pl.pallas_call(
        kernel,
        out_shape=out_shape,
        grid=grid,
        in_specs=in_specs,
        out_specs=out_spec,
        compiler_params=pltpu.CompilerParams(
            dimension_semantics=("parallel", "parallel", "parallel", "parallel"),
            vmem_limit_bytes=32 * 1024 * 1024,
        ),
        cost_estimate=pl.CostEstimate(flops=int(flops), transcendentals=0,
                                      bytes_accessed=int(bytes_accessed)),
    )(*args)

    if y_scale > 1:
        out = out.reshape(B, C, OH, OW)   # contiguous -> free reshape
    return out


if __name__ == "__main__":
    key = jax.random.PRNGKey(0)
    k1, k2, k3, k4 = jax.random.split(key, 4)

    def ref_stretch(x, xs, ys):
        return jnp.repeat(jnp.repeat(x, ys, axis=2), xs, axis=3)

    # 1) f32, both scales > 1: chunked W matmul (exact 3-split) + 5-D sublane broadcast.
    x1 = jax.random.normal(k1, (2, 4, 16, 256), dtype=jnp.float32)
    o1 = jax.block_until_ready(stretch2d(x1, x_scale=2, y_scale=2))
    assert o1.shape == (2, 4, 32, 512) and o1.dtype == x1.dtype, o1.shape
    assert jnp.array_equal(o1, ref_stretch(x1, 2, 2)), "config1 mismatch"

    # 2) bf16, x_scale only: single-pass MXU copy, dense 4-D lane-aligned output.
    x2 = jax.random.normal(k2, (1, 2, 8, 128), dtype=jnp.float32).astype(jnp.bfloat16)
    o2 = jax.block_until_ready(stretch2d(x2, x_scale=3, y_scale=1))
    assert o2.shape == (1, 2, 8, 384) and o2.dtype == jnp.bfloat16, o2.shape
    assert jnp.array_equal(o2, ref_stretch(x2, 3, 1)), "config2 mismatch"

    # 3) f32, small non-128-aligned W (full-dim blocks).
    x3 = jax.random.normal(k3, (1, 2, 8, 16), dtype=jnp.float32)
    o3 = jax.block_until_ready(stretch2d(x3, x_scale=5, y_scale=1))
    assert o3.shape == (1, 2, 8, 80), o3.shape
    assert jnp.array_equal(o3, ref_stretch(x3, 5, 1)), "config3 mismatch"

    # 4) f32, y_scale only: no MXU at all, pure sublane broadcast.
    x4 = jax.random.normal(k4, (2, 3, 8, 128), dtype=jnp.float32)
    o4 = jax.block_until_ready(stretch2d(x4, x_scale=1, y_scale=3))
    assert o4.shape == (2, 3, 24, 128), o4.shape
    assert jnp.array_equal(o4, ref_stretch(x4, 1, 3)), "config4 mismatch"

    print("KERNEL_OK")
</pallas_src>

<mosaic_0001>
module attributes {stable_mosaic.version = 11 : i64} {
  func.func @_stretch2d_kernel(%arg0: i32, %arg1: i32, %arg2: i32, %arg3: i32, %arg4: memref<1x1x16x256xf32, #tpu.memory_space<vmem>>, %arg5: memref<128x256xbf16, #tpu.memory_space<vmem>>, %arg6: memref<1x1x16x2x512xf32, #tpu.memory_space<vmem>>) attributes {dimension_semantics = [#tpu.dimension_semantics<parallel>, #tpu.dimension_semantics<parallel>, #tpu.dimension_semantics<parallel>, #tpu.dimension_semantics<parallel>], iteration_bounds = array<i64: 2, 4, 1, 1>, scalar_prefetch = 0 : i64, scratch_operands = 0 : i64, tpu.core_type = #tpu.core_type<tc>, window_params = [{transform_indices = @transform_0, window_bounds = array<i64: 1, 1, 16, 256>}, {pipeline_mode = #tpu.pipeline_mode<synchronous>, transform_indices = @transform_1, window_bounds = array<i64: 128, 256>}, {transform_indices = @transform_2, window_bounds = array<i64: 1, 1, 16, 2, 512>}]} {
    %c0 = arith.constant 0 : index
    %c0_0 = arith.constant 0 : index
    %c0_1 = arith.constant 0 : index
    %c0_2 = arith.constant 0 : index
    %0 = vector.load %arg4[%c0, %c0_0, %c0_1, %c0_2] : memref<1x1x16x256xf32, #tpu.memory_space<vmem>>, vector<1x1x16x128xf32>
    %1 = vector.shape_cast %0 : vector<1x1x16x128xf32> to vector<16x128xf32>
    %c0_3 = arith.constant 0 : index
    %c0_4 = arith.constant 0 : index
    %2 = vector.load %arg5[%c0_3, %c0_4] : memref<128x256xbf16, #tpu.memory_space<vmem>>, vector<128x256xbf16>
    %3 = arith.truncf %1 : vector<16x128xf32> to vector<16x128xbf16>
    %4 = arith.extf %3 : vector<16x128xbf16> to vector<16x128xf32>
    %5 = arith.subf %1, %4 : vector<16x128xf32>
    %6 = arith.truncf %5 : vector<16x128xf32> to vector<16x128xbf16>
    %7 = arith.extf %6 : vector<16x128xbf16> to vector<16x128xf32>
    %8 = arith.subf %5, %7 : vector<16x128xf32>
    %9 = arith.truncf %8 : vector<16x128xf32> to vector<16x128xbf16>
    %cst = arith.constant dense<0.000000e+00> : vector<16x256xf32>
    %10 = tpu.matmul %3, %2, %cst {dimension_numbers = #tpu.dot_dimension_numbers<[1], [0], [0], [1], [0, 0, 1, 1], [], []>} : vector<16x128xbf16>, vector<128x256xbf16>, vector<16x256xf32> -> vector<16x256xf32>
    %cst_5 = arith.constant dense<0.000000e+00> : vector<16x256xf32>
    %11 = tpu.matmul %6, %2, %cst_5 {dimension_numbers = #tpu.dot_dimension_numbers<[1], [0], [0], [1], [0, 0, 1, 1], [], []>} : vector<16x128xbf16>, vector<128x256xbf16>, vector<16x256xf32> -> vector<16x256xf32>
    %12 = arith.addf %10, %11 : vector<16x256xf32>
    %cst_6 = arith.constant dense<0.000000e+00> : vector<16x256xf32>
    %13 = tpu.matmul %9, %2, %cst_6 {dimension_numbers = #tpu.dot_dimension_numbers<[1], [0], [0], [1], [0, 0, 1, 1], [], []>} : vector<16x128xbf16>, vector<128x256xbf16>, vector<16x256xf32> -> vector<16x256xf32>
    %14 = arith.addf %12, %13 : vector<16x256xf32>
    %15 = vector.shape_cast %14 : vector<16x256xf32> to vector<16x1x256xf32>
    %16 = vector.shape_cast %15 : vector<16x1x256xf32> to vector<16x1x256xf32>
    %17 = vector.broadcast %16 : vector<16x1x256xf32> to vector<16x2x256xf32>
    %c0_7 = arith.constant 0 : index
    %c0_8 = arith.constant 0 : index
    %c0_9 = arith.constant 0 : index
    %c0_10 = arith.constant 0 : index
    %c0_11 = arith.constant 0 : index
    %18 = vector.load %arg6[%c0_7, %c0_8, %c0_9, %c0_10, %c0_11] : memref<1x1x16x2x512xf32, #tpu.memory_space<vmem>>, vector<1x1x16x2x256xf32>
    %19 = vector.shape_cast %18 : vector<1x1x16x2x256xf32> to vector<16x2x256xf32>
    %20 = vector.shape_cast %17 : vector<16x2x256xf32> to vector<1x1x16x2x256xf32>
    tpu.vector_store %arg6[%c0_7, %c0_8, %c0_9, %c0_10, %c0_11], %20 {strides = array<i32>} : memref<1x1x16x2x512xf32, #tpu.memory_space<vmem>>, vector<1x1x16x2x256xf32>,
    %c0_12 = arith.constant 0 : index
    %c0_13 = arith.constant 0 : index
    %c0_14 = arith.constant 0 : index
    %c128 = arith.constant 128 : index
    %21 = vector.load %arg4[%c0_12, %c0_13, %c0_14, %c128] : memref<1x1x16x256xf32, #tpu.memory_space<vmem>>, vector<1x1x16x128xf32>
    %22 = vector.shape_cast %21 : vector<1x1x16x128xf32> to vector<16x128xf32>
    %c0_15 = arith.constant 0 : index
    %c0_16 = arith.constant 0 : index
    %23 = vector.load %arg5[%c0_15, %c0_16] : memref<128x256xbf16, #tpu.memory_space<vmem>>, vector<128x256xbf16>
    %24 = arith.truncf %22 : vector<16x128xf32> to vector<16x128xbf16>
    %25 = arith.extf %24 : vector<16x128xbf16> to vector<16x128xf32>
    %26 = arith.subf %22, %25 : vector<16x128xf32>
    %27 = arith.truncf %26 : vector<16x128xf32> to vector<16x128xbf16>
    %28 = arith.extf %27 : vector<16x128xbf16> to vector<16x128xf32>
    %29 = arith.subf %26, %28 : vector<16x128xf32>
    %30 = arith.truncf %29 : vector<16x128xf32> to vector<16x128xbf16>
    %cst_17 = arith.constant dense<0.000000e+00> : vector<16x256xf32>
    %31 = tpu.matmul %24, %23, %cst_17 {dimension_numbers = #tpu.dot_dimension_numbers<[1], [0], [0], [1], [0, 0, 1, 1], [], []>} : vector<16x128xbf16>, vector<128x256xbf16>, vector<16x256xf32> -> vector<16x256xf32>
    %cst_18 = arith.constant dense<0.000000e+00> : vector<16x256xf32>
    %32 = tpu.matmul %27, %23, %cst_18 {dimension_numbers = #tpu.dot_dimension_numbers<[1], [0], [0], [1], [0, 0, 1, 1], [], []>} : vector<16x128xbf16>, vector<128x256xbf16>, vector<16x256xf32> -> vector<16x256xf32>
    %33 = arith.addf %31, %32 : vector<16x256xf32>
    %cst_19 = arith.constant dense<0.000000e+00> : vector<16x256xf32>
    %34 = tpu.matmul %30, %23, %cst_19 {dimension_numbers = #tpu.dot_dimension_numbers<[1], [0], [0], [1], [0, 0, 1, 1], [], []>} : vector<16x128xbf16>, vector<128x256xbf16>, vector<16x256xf32> -> vector<16x256xf32>
    %35 = arith.addf %33, %34 : vector<16x256xf32>
    %36 = vector.shape_cast %35 : vector<16x256xf32> to vector<16x1x256xf32>
    %37 = vector.shape_cast %36 : vector<16x1x256xf32> to vector<16x1x256xf32>
    %38 = vector.broadcast %37 : vector<16x1x256xf32> to vector<16x2x256xf32>
    %c0_20 = arith.constant 0 : index
    %c0_21 = arith.constant 0 : index
    %c0_22 = arith.constant 0 : index
    %c0_23 = arith.constant 0 : index
    %c256 = arith.constant 256 : index
    %39 = vector.load %arg6[%c0_20, %c0_21, %c0_22, %c0_23, %c256] : memref<1x1x16x2x512xf32, #tpu.memory_space<vmem>>, vector<1x1x16x2x256xf32>
    %40 = vector.shape_cast %39 : vector<1x1x16x2x256xf32> to vector<16x2x256xf32>
    %41 = vector.shape_cast %38 : vector<16x2x256xf32> to vector<1x1x16x2x256xf32>
    tpu.vector_store %arg6[%c0_20, %c0_21, %c0_22, %c0_23, %c256], %41 {strides = array<i32>} : memref<1x1x16x2x512xf32, #tpu.memory_space<vmem>>, vector<1x1x16x2x256xf32>,
    return
  }
  func.func @transform_0(%arg0: i32, %arg1: i32, %arg2: i32, %arg3: i32) -> (i32, i32, i32, i32) {
    %c0_i32 = arith.constant 0 : i32
    return %arg0, %arg1, %arg2, %arg3 : i32, i32, i32, i32
  }
  func.func @transform_1(%arg0: i32, %arg1: i32, %arg2: i32, %arg3: i32) -> (i32, i32) {
    %c0_i32 = arith.constant 0 : i32
    %c0_i32_0 = arith.constant 0 : i32
    %c0_i32_1 = arith.constant 0 : i32
    return %c0_i32, %c0_i32_0 : i32, i32
  }
  func.func @transform_2(%arg0: i32, %arg1: i32, %arg2: i32, %arg3: i32) -> (i32, i32, i32, i32, i32) {
    %c0_i32 = arith.constant 0 : i32
    %c0_i32_0 = arith.constant 0 : i32
    return %arg0, %arg1, %arg2, %c0_i32, %arg3 : i32, i32, i32, i32, i32
  }
}

</mosaic_0001>

<llo_original>
// kernel: tpu_custom_call.1
$region0: #{tpu_custom_call.1}
  #allocation0 [shape = 'u32[]', space=smem, size = 0x4, offset = 0x4, fixed_abs, tag = 'smem constant byte address 0x4 - core index']
  #allocation1 [shape = 'u32[144,128]{1,0:T(1,128)}', space=vmem, size = 0x12000, scoped, tag = 'internal scratch']
  %s0 = inlined_call_operand.hbm [shape: f32[2,4,16,256], index: 0, kind: input, shape index: {}]
  %s1 = inlined_call_operand.hbm [shape: bf16[128,256], index: 1, kind: input, shape index: {}]
  %s2 = inlined_call_operand.hbm [shape: f32[2,4,16,2,512], index: 2, kind: output, shape index: {}]
  %s3 = sld [smem:[#allocation0]]
  $region49: #{tpu_custom_call.1} parent=0
    _
  %s5 = ssub.s32 1, %s3
  %s6 = scalar_select 0, %s5, %s3
  $region1: #{tpu_custom_call.1} parent=0
    #allocation2 [shape = 'u8[32768]{0}', space=vmem, size = 0x8000, scoped, tag = 'input window, operand 0']
    #allocation3 [shape = 's32[2]{0}', space=sflag, size = 0x8, scoped, tag = 'scoped memory for tpu_custom_call.1']
    #allocation4 [shape = 's32[2]{0}', space=sflag, size = 0x8, scoped, tag = 'scoped memory for tpu_custom_call.1']
    #allocation5 [shape = 'u8[65536]{0}', space=vmem, size = 0x10000, scoped, tag = 'input window, operand 1, single buffered']
    #allocation6 [shape = 's32[1]{0}', space=sflag, size = 0x4, scoped, tag = 'scoped memory for tpu_custom_call.1']
    #allocation7 [shape = 'u8[131072]{0}', space=vmem, size = 0x20000, scoped, tag = 'output window, operand 0']
    %7 = vsyncpa [#allocation3], 0
    %s8 = scalar_lea.sflag [#allocation3], 1
    %9 = vsyncpa %s8, 0
    %10 = vsyncpa [#allocation6], 0
    %11 = vsyncpa [#allocation4], 0
    %s12 = scalar_lea.sflag [#allocation4], 1
    %13 = vsyncpa %s12, 0
    loop: start=0, step=1, limit=10
    $region2: #{tpu_custom_call.1} parent=1 // loop_pre_header
      _
    $region3: #{tpu_custom_call.1} parent=1 // loop_header
      %s15 = sphi 0, %s19
      %p16 = scmp.ge.s32.totalorder %s15, 10
      %s22 = sphi 0, %s48
      %s23 = sphi 0, %s44
      %s24 = sphi 0, %s40
      %s25 = sphi 0, %s36
      %s26 = sphi 0, %s22
      %s27 = sphi 0, %s23
      %s28 = sphi 0, %s24
      %s29 = sphi 0, %s25
      %s30 = sphi 0, %s26
      %s31 = sphi 0, %s27
      %s32 = sphi 0, %s28
      %s33 = sphi 0, %s29
      %s57 = sphi 0, %s59
      %s60 = sphi 0, %s57
      %s61 = sphi 0, %s60
      %s77 = sphi 0, %s61
      %s81 = sphi 0, %s81
      %s83 = sphi 0, %s81
      %s84 = sphi 0, %s83
      %s98 = sphi 0, %s84
      %s110 = sphi 0, %s112
      %s113 = sphi 0, %s110
      %s114 = sphi 0, %s113
      %s130 = sphi 0, %s114
    $region4: #{tpu_custom_call.1} parent=1 // loop_header_branch
      %18 = sbr.rel (%p16) target = $region8
    $region5: #{tpu_custom_call.1} parent=1 // loop_body
      %s20 = ssub.s32 %s15, 1
      %s21 = ssub.s32 %s15, 2
      %s34 = sadd.s32 1, %s25
      %p35 = scmp.ge.s32.totalorder %s34, 1
      %s36 = scalar_select %p35, 0, %s34
      %s37 = sadd.s32 1, %s24
      %s38 = scalar_select %p35, %s37, %s24
      %p39 = scmp.ge.s32.totalorder %s38, 1
      %s40 = scalar_select %p39, 0, %s38
      %s41 = sadd.s32 1, %s23
      %s42 = scalar_select %p39, %s41, %s23
      %p43 = scmp.ge.s32.totalorder %s42, 4
      %s44 = scalar_select %p43, 0, %s42
      %s45 = sadd.s32 1, %s22
      %s46 = scalar_select %p43, %s45, %s22
      %p47 = scmp.ge.s32.totalorder %s46, 2
      %s48 = scalar_select %p47, 0, %s46
      %s49 = ssub.s32 %s22, %s48
      %s50 = ssub.s32 %s23, %s44
      %s51 = sor.u32 %s49, %s50
      %s52 = ssub.s32 %s24, %s40
      %s53 = sor.u32 %s51, %s52
      %s54 = ssub.s32 %s25, %s36
      %s55 = sor.u32 %s53, %s54
      %p56 = scmp.eq.s32.totalorder %s55, 0
      %s58 = sadd.s32 %s57, 1
      %s59 = scalar_select %p56, %s57, %s58
      %p62 = pneg %p56
      %p63 = scmp.eq.s32.totalorder %s15, 7
      %p64 = por %p62, %p63
      %p65 = scmp.ne.s32.totalorder %s57, %s60
      %p66 = scmp.eq.s32.totalorder %s15, 0
      %p67 = por %p65, %p66
      %p68 = scmp.ne.s32.totalorder %s57, %s60
      %p69 = scmp.eq.s32.totalorder %s20, 7
      %p70 = por %p68, %p69
      %p71 = scmp.ne.s32.totalorder %s60, %s61
      %p72 = scmp.eq.s32.totalorder %s20, 0
      %p73 = por %p71, %p72
      %p74 = scmp.ne.s32.totalorder %s60, %s61
      %p75 = scmp.eq.s32.totalorder %s21, 7
      %p76 = por %p74, %p75
      %p78 = scmp.ne.s32.totalorder %s61, %s77
      %p79 = scmp.eq.s32.totalorder %s21, 0
      %p80 = por %p78, %p79
      %s82 = sadd.s32 %s81, 1
      %p85 = scmp.eq.s32.totalorder %s15, 7
      %p86 = scmp.ne.s32.totalorder %s81, %s83
      %p87 = scmp.eq.s32.totalorder %s15, 0
      %p88 = por %p86, %p87
      %p89 = scmp.ne.s32.totalorder %s81, %s83
      %p90 = scmp.eq.s32.totalorder %s20, 7
      %p91 = por %p89, %p90
      %p92 = scmp.ne.s32.totalorder %s83, %s84
      %p93 = scmp.eq.s32.totalorder %s20, 0
      %p94 = por %p92, %p93
      %p95 = scmp.ne.s32.totalorder %s83, %s84
      %p96 = scmp.eq.s32.totalorder %s21, 7
      %p97 = por %p95, %p96
      %p99 = scmp.ne.s32.totalorder %s84, %s98
      %p100 = scmp.eq.s32.totalorder %s21, 0
      %p101 = por %p99, %p100
      %s102 = ssub.s32 %s22, %s48
      %s103 = ssub.s32 %s23, %s44
      %s104 = sor.u32 %s102, %s103
      %s105 = ssub.s32 %s24, %s40
      %s106 = sor.u32 %s104, %s105
      %s107 = ssub.s32 %s25, %s36
      %s108 = sor.u32 %s106, %s107
      %p109 = scmp.eq.s32.totalorder %s108, 0
      %s111 = sadd.s32 %s110, 1
      %s112 = scalar_select %p109, %s110, %s111
      %p115 = pneg %p109
      %p116 = scmp.eq.s32.totalorder %s15, 7
      %p117 = por %p115, %p116
      %p118 = scmp.ne.s32.totalorder %s110, %s113
      %p119 = scmp.eq.s32.totalorder %s15, 0
      %p120 = por %p118, %p119
      %p121 = scmp.ne.s32.totalorder %s110, %s113
      %p122 = scmp.eq.s32.totalorder %s20, 7
      %p123 = por %p121, %p122
      %p124 = scmp.ne.s32.totalorder %s113, %s114
      %p125 = scmp.eq.s32.totalorder %s20, 0
      %p126 = por %p124, %p125
      %p127 = scmp.ne.s32.totalorder %s113, %s114
      %p128 = scmp.eq.s32.totalorder %s21, 7
      %p129 = por %p127, %p128
      %p131 = scmp.ne.s32.totalorder %s114, %s130
      %p132 = scmp.eq.s32.totalorder %s21, 0
      %p133 = por %p131, %p132
      %p134 = scmp.le.s32.totalorder 1, %s15
      %p135 = scmp.lt.s32.totalorder %s15, 9
      %p136 = pnand %p134, %p135
      %p137 = pneg %p136
      // Predicated region
      $region9: #{tpu_custom_call.1} parent=5 // pred_check
        _
      $region10: #{tpu_custom_call.1} parent=5 // pred_check_branch
        %139 = sbr.rel (%p136) target = $region12
      $region11: #{tpu_custom_call.1} parent=5 // pred_region
        %s140 = ssub.s32 %s15, 1
        // Predicated region
        $region13: #{tpu_custom_call.1} parent=11 // pred_check
          %p141 = pneg %p94
        $region14: #{tpu_custom_call.1} parent=11 // pred_check_branch
          %143 = sbr.rel (%p141) target = $region16
        $region15: #{tpu_custom_call.1} parent=11 // pred_region
          %s145 = ssub.s32 2048, 2048
          %146 = vsyncadd [#allocation6], %s145
          %s147 = sshll.u32 [#allocation5], 4
          %s148 = int_to_ptr.vmem [resolvable:$true] %s147
          %153 = dma.hbm_to_vmem [thread:$0]  %s1, 2048, %s148, [#allocation6], 128, 128, 8
        $region16: #{tpu_custom_call.1} parent=11 // pred_fallthru
          _
      $region12: #{tpu_custom_call.1} parent=5 // pred_fallthru
        _
      %p154 = scmp.lt.s32.totalorder %s15, 8
      // Predicated region
      $region17: #{tpu_custom_call.1} parent=5 // pred_check
        %p155 = pneg %p154
      $region18: #{tpu_custom_call.1} parent=5 // pred_check_branch
        %157 = sbr.rel (%p155) target = $region20
      $region19: #{tpu_custom_call.1} parent=5 // pred_region
        // Predicated region
        $region21: #{tpu_custom_call.1} parent=19 // pred_check
          %p158 = pneg %p67
        $region22: #{tpu_custom_call.1} parent=19 // pred_check_branch
          %160 = sbr.rel (%p158) target = $region24
        $region23: #{tpu_custom_call.1} parent=19 // pred_region
          %s161 = sand.u32 %s57, 1
          %s162 = scalar_lea.sflag [#allocation3], %s161
          %s163 = sand.u32 %s57, 1
          %s164 = smul.addr %s163, 32
          %s165 = scalar_lea.vmem [#allocation2], %s164
          %s166 = smul.u32 2, %s24
          %s167 = smul.u32 2, %s25
          %s169 = ssub.s32 512, 512
          %170 = vsyncadd %s162, %s169
          %s171 = smul.addr %s166, 2
          %s172 = sadd.s32 %s167, %s171
          %s173 = smul.addr %s23, 4
          %s174 = sadd.s32 %s172, %s173
          %s175 = smul.addr %s22, 16
          %s176 = sadd.s32 %s174, %s175
          %s177 = smul.addr %s176, 128
          %s178 = scalar_lea.hbm %s0, %s177
          %s179 = sshll.u32 %s165, 4
          %s180 = int_to_ptr.vmem [resolvable:$true] %s179
          %185 = dma.hbm_to_vmem [thread:$0]  %s178, 512, %s180, %s162, 256, 256, 16
        $region24: #{tpu_custom_call.1} parent=19 // pred_fallthru
          _
      $region20: #{tpu_custom_call.1} parent=5 // pred_fallthru
        _
      %p186 = scmp.le.s32.totalorder 1, %s15
      %p187 = scmp.lt.s32.totalorder %s15, 9
      %p188 = pnand %p186, %p187
      %p189 = pneg %p188
      // Predicated region
      $region25: #{tpu_custom_call.1} parent=5 // pred_check
        _
      $region26: #{tpu_custom_call.1} parent=5 // pred_check_branch
        %191 = sbr.rel (%p188) target = $region28
      $region27: #{tpu_custom_call.1} parent=5 // pred_region
        %s192 = ssub.s32 %s15, 1
        %s193 = sand.u32 %s60, 1
        %s194 = scalar_lea.sflag [#allocation3], %s193
        %s195 = sand.u32 %s60, 1
        %s196 = smul.addr %s195, 32
        %s197 = scalar_lea.vmem [#allocation2], %s196
        // Predicated region
        $region29: #{tpu_custom_call.1} parent=27 // pred_check
          %p198 = pneg %p73
        $region30: #{tpu_custom_call.1} parent=27 // pred_check_branch
          %200 = sbr.rel (%p198) target = $region32
        $region31: #{tpu_custom_call.1} parent=27 // pred_region
          %201 = dma.done %s194, 512
        $region32: #{tpu_custom_call.1} parent=27 // pred_fallthru
          _
        // Predicated region
        $region33: #{tpu_custom_call.1} parent=27 // pred_check
          %p202 = pneg %p94
        $region34: #{tpu_custom_call.1} parent=27 // pred_check_branch
          %204 = sbr.rel (%p202) target = $region36
        $region35: #{tpu_custom_call.1} parent=27 // pred_region
          %205 = dma.done [#allocation6], 2048
        $region36: #{tpu_custom_call.1} parent=27 // pred_fallthru
          _
        %s206 = sand.u32 %s60, 1
        %s207 = scalar_lea.sflag [#allocation3], %s206
        %s208 = sand.u32 %s60, 1
        %s209 = smul.addr %s208, 32
        %s210 = scalar_lea.vmem [#allocation2], %s209
        %p211 = pneg %p73
        %p212 = pneg %p70
        %p213 = pneg %p94
        %p214 = pneg %p91
        %p215 = pneg %p126
        %p216 = pneg %p123
        %s217 = sand.u32 %s113, 1
        %s218 = scalar_lea.sflag [#allocation4], %s217
        %s219 = sand.u32 %s113, 1
        %s220 = smul.addr %s219, 128
        %s221 = scalar_lea.vmem [#allocation7], %s220
        %s222 = smul.u32 2, %s28
        %s223 = smul.u32 2, %s29
        %s224 = smul.u32 16, %s28
        %s225 = smul.u32 4, %s29
        %v227 = vld [vmem:[%s197] sm:$0xff]
        %v228 = vld [vmem:[%s197 + $0x10] sm:$0xff]
        %v229 = vld [vmem:[#allocation5] sm:$0xff]
        %v230 = vld [vmem:[#allocation5 + $0x8] sm:$0xff]
        %v231 = vld [vmem:[#allocation5 + $0x10] sm:$0xff]
        %v232 = vld [vmem:[#allocation5 + $0x18] sm:$0xff]
        %v233 = vld [vmem:[#allocation5 + $0x20] sm:$0xff]
        %v234 = vld [vmem:[#allocation5 + $0x28] sm:$0xff]
        %v235 = vld [vmem:[#allocation5 + $0x30] sm:$0xff]
        %v236 = vld [vmem:[#allocation5 + $0x38] sm:$0xff]
        %v237 = vld [vmem:[#allocation5 + $0x40] sm:$0xff]
        %v238 = vld [vmem:[#allocation5 + $0x48] sm:$0xff]
        %v239 = vld [vmem:[#allocation5 + $0x50] sm:$0xff]
        %v240 = vld [vmem:[#allocation5 + $0x58] sm:$0xff]
        %v241 = vld [vmem:[#allocation5 + $0x60] sm:$0xff]
        %v242 = vld [vmem:[#allocation5 + $0x68] sm:$0xff]
        %v243 = vld [vmem:[#allocation5 + $0x70] sm:$0xff]
        %v244 = vld [vmem:[#allocation5 + $0x78] sm:$0xff]
        %v245 = vpack.c.bf16 %v228, %v227
        %v246 = vunpack.c.l.bf16 %v245
        %v247 = vunpack.c.h.bf16 %v245
        %v248 = vsub.f32 %v227, %v246
        %v249 = vsub.f32 %v228, %v247
        %v250 = vpack.c.bf16 %v249, %v248
        %v251 = vunpack.c.l.bf16 %v250
        %v252 = vunpack.c.h.bf16 %v250
        %v253 = vsub.f32 %v248, %v251
        %v254 = vsub.f32 %v249, %v252
        %v255 = vpack.c.bf16 %v254, %v253
        %v272 = vunpack.c.l.b16 %v229
        %v273 = vunpack.c.h.b16 %v229
        %v274 = vunpack.c.l.b16 %v230
        %v275 = vunpack.c.h.b16 %v230
        %v276 = vunpack.c.l.b16 %v231
        %v277 = vunpack.c.h.b16 %v231
        %v278 = vunpack.c.l.b16 %v232
        %v279 = vunpack.c.h.b16 %v232
        %v280 = vunpack.c.l.b16 %v233
        %v281 = vunpack.c.h.b16 %v233
        %v282 = vunpack.c.l.b16 %v234
        %v283 = vunpack.c.h.b16 %v234
        %v284 = vunpack.c.l.b16 %v235
        %v285 = vunpack.c.h.b16 %v235
        %v286 = vunpack.c.l.b16 %v236
        %v287 = vunpack.c.h.b16 %v236
        %v288 = vunpack.c.l.b16 %v237
        %v289 = vunpack.c.h.b16 %v237
        %v290 = vunpack.c.l.b16 %v238
        %v291 = vunpack.c.h.b16 %v238
        %v292 = vunpack.c.l.b16 %v239
        %v293 = vunpack.c.h.b16 %v239
        %v294 = vunpack.c.l.b16 %v240
        %v295 = vunpack.c.h.b16 %v240
        %v296 = vunpack.c.l.b16 %v241
        %v297 = vunpack.c.h.b16 %v241
        %v298 = vunpack.c.l.b16 %v242
        %v299 = vunpack.c.h.b16 %v242
        %v300 = vunpack.c.l.b16 %v243
        %v301 = vunpack.c.h.b16 %v243
        %v302 = vunpack.c.l.b16 %v244
        %v303 = vunpack.c.h.b16 %v244
        %v304 = vpack.c.b16 %v274, %v272
        %v305 = vpack.c.b16 %v275, %v273
        %v306 = vpack.c.b16 %v278, %v276
        %v307 = vpack.c.b16 %v279, %v277
        %v308 = vpack.c.b16 %v282, %v280
        %v309 = vpack.c.b16 %v283, %v281
        %v310 = vpack.c.b16 %v286, %v284
        %v311 = vpack.c.b16 %v287, %v285
        %v312 = vpack.c.b16 %v290, %v288
        %v313 = vpack.c.b16 %v291, %v289
        %v314 = vpack.c.b16 %v294, %v292
        %v315 = vpack.c.b16 %v295, %v293
        %v316 = vpack.c.b16 %v298, %v296
        %v317 = vpack.c.b16 %v299, %v297
        %v318 = vpack.c.b16 %v302, %v300
        %v319 = vpack.c.b16 %v303, %v301
        %336 = vmatprep.subr.bf16.mxu0 %v305
        %337 = vmatpush1.bf16.msra.mxu0 %v304
        %338 = vmatprep.subr.bf16.mxu0 %v307
        %339 = vmatpush1.bf16.msra.mxu0 %v306
        %340 = vmatprep.subr.bf16.mxu0 %v309
        %341 = vmatpush1.bf16.msra.mxu0 %v308
        %342 = vmatprep.subr.bf16.mxu0 %v311
        %343 = vmatpush1.bf16.msra.mxu0 %v310
        %344 = vmatprep.subr.bf16.mxu0 %v313
        %345 = vmatpush1.bf16.msra.mxu0 %v312
        %346 = vmatprep.subr.bf16.mxu0 %v315
        %347 = vmatpush1.bf16.msra.mxu0 %v314
        %348 = vmatprep.subr.bf16.mxu0 %v317
        %349 = vmatpush1.bf16.msra.mxu0 %v316
        %350 = vmatprep.subr.bf16.mxu0 %v319
        %351 = vmatpush1.bf16.msra.mxu0 %v318
        %352 = vmatprep.subr.bf16.mxu0 0
        %353 = vmatpush1.bf16.msra.mxu0 0
        %354 = vmatprep.subr.bf16.mxu0 0
        %355 = vmatpush1.bf16.msra.mxu0 0
        %356 = vmatprep.subr.bf16.mxu0 0
        %357 = vmatpush1.bf16.msra.mxu0 0
        %358 = vmatprep.subr.bf16.mxu0 0
        %359 = vmatpush1.bf16.msra.mxu0 0
        %360 = vmatprep.subr.bf16.mxu0 0
        %361 = vmatpush1.bf16.msra.mxu0 0
        %362 = vmatprep.subr.bf16.mxu0 0
        %363 = vmatpush1.bf16.msra.mxu0 0
        %364 = vmatprep.subr.bf16.mxu0 0
        %365 = vmatpush1.bf16.msra.mxu0 0
        %366 = vmatprep.subr.bf16.mxu0 0
        %367 = vmatpush1.bf16.msra.mxu0 0
        %368 = vmatprep.mubr.bf16.mxu0 0
        %369 = vmatmul.mubr.bf16.gmra.mrb[0].mxu0 %v250
        %v370 = vpop.f32.mrb[0].mxu0
        %v371 = vadd.f32 0.0, %v370
        %v372 = vpop.f32.mrb[0].mxu0
        %v373 = vadd.f32 0.0, %v372
        %v374 = vpop.f32.mrb[0].mxu0
        %v375 = vadd.f32 0.0, %v374
        %v376 = vpop.f32.mrb[0].mxu0
        %v377 = vadd.f32 0.0, %v376
        %378 = vdwg.mxu0
        %379 = vmatprep.subr.bf16.mxu0 %v305
        %380 = vmatpush1.bf16.msra.mxu0 %v304
        %381 = vmatprep.subr.bf16.mxu0 %v307
        %382 = vmatpush1.bf16.msra.mxu0 %v306
        %383 = vmatprep.subr.bf16.mxu0 %v309
        %384 = vmatpush1.bf16.msra.mxu0 %v308
        %385 = vmatprep.subr.bf16.mxu0 %v311
        %386 = vmatpush1.bf16.msra.mxu0 %v310
        %387 = vmatprep.subr.bf16.mxu0 %v313
        %388 = vmatpush1.bf16.msra.mxu0 %v312
        %389 = vmatprep.subr.bf16.mxu0 %v315
        %390 = vmatpush1.bf16.msra.mxu0 %v314
        %391 = vmatprep.subr.bf16.mxu0 %v317
        %392 = vmatpush1.bf16.msra.mxu0 %v316
        %393 = vmatprep.subr.bf16.mxu0 %v319
        %394 = vmatpush1.bf16.msra.mxu0 %v318
        %395 = vmatprep.subr.bf16.mxu0 0
        %396 = vmatpush1.bf16.msra.mxu0 0
        %397 = vmatprep.subr.bf16.mxu0 0
        %398 = vmatpush1.bf16.msra.mxu0 0
        %399 = vmatprep.subr.bf16.mxu0 0
        %400 = vmatpush1.bf16.msra.mxu0 0
        %401 = vmatprep.subr.bf16.mxu0 0
        %402 = vmatpush1.bf16.msra.mxu0 0
        %403 = vmatprep.subr.bf16.mxu0 0
        %404 = vmatpush1.bf16.msra.mxu0 0
        %405 = vmatprep.subr.bf16.mxu0 0
        %406 = vmatpush1.bf16.msra.mxu0 0
        %407 = vmatprep.subr.bf16.mxu0 0
        %408 = vmatpush1.bf16.msra.mxu0 0
        %409 = vmatprep.subr.bf16.mxu0 0
        %410 = vmatpush1.bf16.msra.mxu0 0
        %411 = vmatprep.mubr.bf16.mxu0 0
        %412 = vmatmul.mubr.bf16.gmra.mrb[0].mxu0 %v245
        %v413 = vpop.f32.mrb[0].mxu0
        %v414 = vadd.f32 %v371, %v413
        %v415 = vpop.f32.mrb[0].mxu0
        %v416 = vadd.f32 %v373, %v415
        %v417 = vpop.f32.mrb[0].mxu0
        %v418 = vadd.f32 %v375, %v417
        %v419 = vpop.f32.mrb[0].mxu0
        %v420 = vadd.f32 %v377, %v419
        %421 = vdwg.mxu0
        %422 = vmatprep.subr.bf16.mxu0 %v305
        %423 = vmatpush1.bf16.msra.mxu0 %v304
        %424 = vmatprep.subr.bf16.mxu0 %v307
        %425 = vmatpush1.bf16.msra.mxu0 %v306
        %426 = vmatprep.subr.bf16.mxu0 %v309
        %427 = vmatpush1.bf16.msra.mxu0 %v308
        %428 = vmatprep.subr.bf16.mxu0 %v311
        %429 = vmatpush1.bf16.msra.mxu0 %v310
        %430 = vmatprep.subr.bf16.mxu0 %v313
        %431 = vmatpush1.bf16.msra.mxu0 %v312
        %432 = vmatprep.subr.bf16.mxu0 %v315
        %433 = vmatpush1.bf16.msra.mxu0 %v314
        %434 = vmatprep.subr.bf16.mxu0 %v317
        %435 = vmatpush1.bf16.msra.mxu0 %v316
        %436 = vmatprep.subr.bf16.mxu0 %v319
        %437 = vmatpush1.bf16.msra.mxu0 %v318
        %438 = vmatprep.subr.bf16.mxu0 0
        %439 = vmatpush1.bf16.msra.mxu0 0
        %440 = vmatprep.subr.bf16.mxu0 0
        %441 = vmatpush1.bf16.msra.mxu0 0
        %442 = vmatprep.subr.bf16.mxu0 0
        %443 = vmatpush1.bf16.msra.mxu0 0
        %444 = vmatprep.subr.bf16.mxu0 0
        %445 = vmatpush1.bf16.msra.mxu0 0
        %446 = vmatprep.subr.bf16.mxu0 0
        %447 = vmatpush1.bf16.msra.mxu0 0
        %448 = vmatprep.subr.bf16.mxu0 0
        %449 = vmatpush1.bf16.msra.mxu0 0
        %450 = vmatprep.subr.bf16.mxu0 0
        %451 = vmatpush1.bf16.msra.mxu0 0
        %452 = vmatprep.subr.bf16.mxu0 0
        %453 = vmatpush1.bf16.msra.mxu0 0
        %454 = vmatprep.mubr.bf16.mxu0 0
        %455 = vmatmul.mubr.bf16.gmra.mrb[0].mxu0 %v255
        %v456 = vpop.f32.mrb[0].mxu0
        %v457 = vadd.f32 0.0, %v456
        %v458 = vpop.f32.mrb[0].mxu0
        %v459 = vadd.f32 0.0, %v458
        %v460 = vpop.f32.mrb[0].mxu0
        %v461 = vadd.f32 0.0, %v460
        %v462 = vpop.f32.mrb[0].mxu0
        %v463 = vadd.f32 0.0, %v462
        %464 = vdwg.mxu0
        %v465 = vadd.f32 %v414, %v457
        %v466 = vadd.f32 %v416, %v459
        %v467 = vadd.f32 %v418, %v461
        %v468 = vadd.f32 %v420, %v463
        %v473 = vcombine.low %v465, %v466
        %v474 = vcombine.high %v465, %v466
        %v476 = vunpack.c.l.s4 1966171168
        %v477 = vunpack.c.0.s8 %v476
        %v478 = vlaneseq
        %v479 = vshrl.u32 %v478, 7
        %v480 = vsub.s32 %v477, %v479
        %v481 = vrot.slane %v473, %v480
        %v483 = vunpack.c.l.s4 1966171168
        %v484 = vunpack.c.0.s8 %v483
        %v485 = vlaneseq
        %v486 = vshrl.u32 %v485, 7
        %v487 = vsub.s32 %v484, %v486
        %v488 = vrot.slane %v474, %v487
        %v489 = vcombine.high %v481, %v481
        %v490 = vcombine.high %v488, %v488
        %v492 = vunpack.c.l.s4 1966171168
        %v493 = vunpack.c.0.s8 %v492
        %v494 = vlaneseq
        %v495 = vshrl.u32 %v494, 7
        %v496 = vsub.s32 %v493, %v495
        %v497 = vrot.slane %v481, %v496
        %v499 = vunpack.c.l.s4 1966171168
        %v500 = vunpack.c.0.s8 %v499
        %v501 = vlaneseq
        %v502 = vshrl.u32 %v501, 7
        %v503 = vsub.s32 %v500, %v502
        %v504 = vrot.slane %v488, %v503
        %v506 = vunpack.c.l.s4 1966171168
        %v507 = vunpack.c.0.s8 %v506
        %v508 = vlaneseq
        %v509 = vshrl.u32 %v508, 7
        %v510 = vsub.s32 %v507, %v509
        %v511 = vrot.slane %v489, %v510
        %v513 = vunpack.c.l.s4 1966171168
        %v514 = vunpack.c.0.s8 %v513
        %v515 = vlaneseq
        %v516 = vshrl.u32 %v515, 7
        %v517 = vsub.s32 %v514, %v516
        %v518 = vrot.slane %v490, %v517
        %v519 = vcombine.high %v497, %v497
        %v520 = vcombine.high %v504, %v504
        %v521 = vcombine.high %v511, %v511
        %v522 = vcombine.high %v518, %v518
        %v523 = vcombine.low %v467, %v468
        %v524 = vcombine.high %v467, %v468
        %v526 = vunpack.c.l.s4 1966171168
        %v527 = vunpack.c.0.s8 %v526
        %v528 = vlaneseq
        %v529 = vshrl.u32 %v528, 7
        %v530 = vsub.s32 %v527, %v529
        %v531 = vrot.slane %v523, %v530
        %v533 = vunpack.c.l.s4 1966171168
        %v534 = vunpack.c.0.s8 %v533
        %v535 = vlaneseq
        %v536 = vshrl.u32 %v535, 7
        %v537 = vsub.s32 %v534, %v536
        %v538 = vrot.slane %v524, %v537
        %v539 = vcombine.high %v531, %v531
        %v540 = vcombine.high %v538, %v538
        %v542 = vunpack.c.l.s4 1966171168
        %v543 = vunpack.c.0.s8 %v542
        %v544 = vlaneseq
        %v545 = vshrl.u32 %v544, 7
        %v546 = vsub.s32 %v543, %v545
        %v547 = vrot.slane %v531, %v546
        %v549 = vunpack.c.l.s4 1966171168
        %v550 = vunpack.c.0.s8 %v549
        %v551 = vlaneseq
        %v552 = vshrl.u32 %v551, 7
        %v553 = vsub.s32 %v550, %v552
        %v554 = vrot.slane %v538, %v553
        %v556 = vunpack.c.l.s4 1966171168
        %v557 = vunpack.c.0.s8 %v556
        %v558 = vlaneseq
        %v559 = vshrl.u32 %v558, 7
        %v560 = vsub.s32 %v557, %v559
        %v561 = vrot.slane %v539, %v560
        %v563 = vunpack.c.l.s4 1966171168
        %v564 = vunpack.c.0.s8 %v563
        %v565 = vlaneseq
        %v566 = vshrl.u32 %v565, 7
        %v567 = vsub.s32 %v564, %v566
        %v568 = vrot.slane %v540, %v567
        %v569 = vcombine.high %v547, %v547
        %v570 = vcombine.high %v554, %v554
        %v571 = vcombine.high %v561, %v561
        %v572 = vcombine.high %v568, %v568
        %v573 = vlaneseq
        %v574 = vshrl.u32 %v573, 7
        %v575 = vsub.s32 0, %v574
        %v576 = vrot.slane %v497, %v575
        %v577 = vlaneseq
        %v578 = vshrl.u32 %v577, 7
        %v579 = vsub.s32 1, %v578
        %v580 = vrot.slane %v497, %v579
        %v581 = vlaneseq
        %v582 = vshrl.u32 %v581, 7
        %v583 = vsub.s32 0, %v582
        %v584 = vrot.slane %v511, %v583
        %v585 = vlaneseq
        %v586 = vshrl.u32 %v585, 7
        %v587 = vsub.s32 1, %v586
        %v588 = vrot.slane %v511, %v587
        %v589 = vlaneseq
        %v590 = vshrl.u32 %v589, 7
        %v591 = vsub.s32 0, %v590
        %v592 = vrot.slane %v519, %v591
        %v593 = vlaneseq
        %v594 = vshrl.u32 %v593, 7
        %v595 = vsub.s32 1, %v594
        %v596 = vrot.slane %v519, %v595
        %v597 = vlaneseq
        %v598 = vshrl.u32 %v597, 7
        %v599 = vsub.s32 0, %v598
        %v600 = vrot.slane %v521, %v599
        %v601 = vlaneseq
        %v602 = vshrl.u32 %v601, 7
        %v603 = vsub.s32 1, %v602
        %v604 = vrot.slane %v521, %v603
        %v605 = vlaneseq
        %v606 = vshrl.u32 %v605, 7
        %v607 = vsub.s32 0, %v606
        %v608 = vrot.slane %v504, %v607
        %v609 = vlaneseq
        %v610 = vshrl.u32 %v609, 7
        %v611 = vsub.s32 1, %v610
        %v612 = vrot.slane %v504, %v611
        %v613 = vlaneseq
        %v614 = vshrl.u32 %v613, 7
        %v615 = vsub.s32 0, %v614
        %v616 = vrot.slane %v518, %v615
        %v617 = vlaneseq
        %v618 = vshrl.u32 %v617, 7
        %v619 = vsub.s32 1, %v618
        %v620 = vrot.slane %v518, %v619
        %v621 = vlaneseq
        %v622 = vshrl.u32 %v621, 7
        %v623 = vsub.s32 0, %v622
        %v624 = vrot.slane %v520, %v623
        %v625 = vlaneseq
        %v626 = vshrl.u32 %v625, 7
        %v627 = vsub.s32 1, %v626
        %v628 = vrot.slane %v520, %v627
        %v629 = vlaneseq
        %v630 = vshrl.u32 %v629, 7
        %v631 = vsub.s32 0, %v630
        %v632 = vrot.slane %v522, %v631
        %v633 = vlaneseq
        %v634 = vshrl.u32 %v633, 7
        %v635 = vsub.s32 1, %v634
        %v636 = vrot.slane %v522, %v635
        %v637 = vlaneseq
        %v638 = vshrl.u32 %v637, 7
        %v639 = vsub.s32 0, %v638
        %v640 = vrot.slane %v547, %v639
        %v641 = vlaneseq
        %v642 = vshrl.u32 %v641, 7
        %v643 = vsub.s32 1, %v642
        %v644 = vrot.slane %v547, %v643
        %v645 = vlaneseq
        %v646 = vshrl.u32 %v645, 7
        %v647 = vsub.s32 0, %v646
        %v648 = vrot.slane %v561, %v647
        %v649 = vlaneseq
        %v650 = vshrl.u32 %v649, 7
        %v651 = vsub.s32 1, %v650
        %v652 = vrot.slane %v561, %v651
        %v653 = vlaneseq
        %v654 = vshrl.u32 %v653, 7
        %v655 = vsub.s32 0, %v654
        %v656 = vrot.slane %v569, %v655
        %v657 = vlaneseq
        %v658 = vshrl.u32 %v657, 7
        %v659 = vsub.s32 1, %v658
        %v660 = vrot.slane %v569, %v659
        %v661 = vlaneseq
        %v662 = vshrl.u32 %v661, 7
        %v663 = vsub.s32 0, %v662
        %v664 = vrot.slane %v571, %v663
        %v665 = vlaneseq
        %v666 = vshrl.u32 %v665, 7
        %v667 = vsub.s32 1, %v666
        %v668 = vrot.slane %v571, %v667
        %v669 = vlaneseq
        %v670 = vshrl.u32 %v669, 7
        %v671 = vsub.s32 0, %v670
        %v672 = vrot.slane %v554, %v671
        %v673 = vlaneseq
        %v674 = vshrl.u32 %v673, 7
        %v675 = vsub.s32 1, %v674
        %v676 = vrot.slane %v554, %v675
        %v677 = vlaneseq
        %v678 = vshrl.u32 %v677, 7
        %v679 = vsub.s32 0, %v678
        %v680 = vrot.slane %v568, %v679
        %v681 = vlaneseq
        %v682 = vshrl.u32 %v681, 7
        %v683 = vsub.s32 1, %v682
        %v684 = vrot.slane %v568, %v683
        %v685 = vlaneseq
        %v686 = vshrl.u32 %v685, 7
        %v687 = vsub.s32 0, %v686
        %v688 = vrot.slane %v570, %v687
        %v689 = vlaneseq
        %v690 = vshrl.u32 %v689, 7
        %v691 = vsub.s32 1, %v690
        %v692 = vrot.slane %v570, %v691
        %v693 = vlaneseq
        %v694 = vshrl.u32 %v693, 7
        %v695 = vsub.s32 0, %v694
        %v696 = vrot.slane %v572, %v695
        %v697 = vlaneseq
        %v698 = vshrl.u32 %v697, 7
        %v699 = vsub.s32 1, %v698
        %v700 = vrot.slane %v572, %v699
        %v701 = vcombine.low %v576, %v580
        %v703 = vunpack.c.l.s4 1983009808
        %v704 = vunpack.c.0.s8 %v703
        %v705 = vlaneseq
        %v706 = vshrl.u32 %v705, 7
        %v707 = vsub.s32 %v704, %v706
        %v708 = vrot.slane %v701, %v707
        %v709 = vcombine.low %v584, %v588
        %v711 = vunpack.c.l.s4 1983009808
        %v712 = vunpack.c.0.s8 %v711
        %v713 = vlaneseq
        %v714 = vshrl.u32 %v713, 7
        %v715 = vsub.s32 %v712, %v714
        %v716 = vrot.slane %v709, %v715
        %v717 = vcombine.low %v592, %v596
        %v719 = vunpack.c.l.s4 1983009808
        %v720 = vunpack.c.0.s8 %v719
        %v721 = vlaneseq
        %v722 = vshrl.u32 %v721, 7
        %v723 = vsub.s32 %v720, %v722
        %v724 = vrot.slane %v717, %v723
        %v725 = vcombine.low %v600, %v604
        %v727 = vunpack.c.l.s4 1983009808
        %v728 = vunpack.c.0.s8 %v727
        %v729 = vlaneseq
        %v730 = vshrl.u32 %v729, 7
        %v731 = vsub.s32 %v728, %v730
        %v732 = vrot.slane %v725, %v731
        %v733 = vcombine.low %v608, %v612
        %v735 = vunpack.c.l.s4 1983009808
        %v736 = vunpack.c.0.s8 %v735
        %v737 = vlaneseq
        %v738 = vshrl.u32 %v737, 7
        %v739 = vsub.s32 %v736, %v738
        %v740 = vrot.slane %v733, %v739
        %v741 = vcombine.low %v616, %v620
        %v743 = vunpack.c.l.s4 1983009808
        %v744 = vunpack.c.0.s8 %v743
        %v745 = vlaneseq
        %v746 = vshrl.u32 %v745, 7
        %v747 = vsub.s32 %v744, %v746
        %v748 = vrot.slane %v741, %v747
        %v749 = vcombine.low %v624, %v628
        %v751 = vunpack.c.l.s4 1983009808
        %v752 = vunpack.c.0.s8 %v751
        %v753 = vlaneseq
        %v754 = vshrl.u32 %v753, 7
        %v755 = vsub.s32 %v752, %v754
        %v756 = vrot.slane %v749, %v755
        %v757 = vcombine.low %v632, %v636
        %v759 = vunpack.c.l.s4 1983009808
        %v760 = vunpack.c.0.s8 %v759
        %v761 = vlaneseq
        %v762 = vshrl.u32 %v761, 7
        %v763 = vsub.s32 %v760, %v762
        %v764 = vrot.slane %v757, %v763
        %v765 = vcombine.low %v640, %v644
        %v767 = vunpack.c.l.s4 1983009808
        %v768 = vunpack.c.0.s8 %v767
        %v769 = vlaneseq
        %v770 = vshrl.u32 %v769, 7
        %v771 = vsub.s32 %v768, %v770
        %v772 = vrot.slane %v765, %v771
        %v773 = vcombine.low %v648, %v652
        %v775 = vunpack.c.l.s4 1983009808
        %v776 = vunpack.c.0.s8 %v775
        %v777 = vlaneseq
        %v778 = vshrl.u32 %v777, 7
        %v779 = vsub.s32 %v776, %v778
        %v780 = vrot.slane %v773, %v779
        %v781 = vcombine.low %v656, %v660
        %v783 = vunpack.c.l.s4 1983009808
        %v784 = vunpack.c.0.s8 %v783
        %v785 = vlaneseq
        %v786 = vshrl.u32 %v785, 7
        %v787 = vsub.s32 %v784, %v786
        %v788 = vrot.slane %v781, %v787
        %v789 = vcombine.low %v664, %v668
        %v791 = vunpack.c.l.s4 1983009808
        %v792 = vunpack.c.0.s8 %v791
        %v793 = vlaneseq
        %v794 = vshrl.u32 %v793, 7
        %v795 = vsub.s32 %v792, %v794
        %v796 = vrot.slane %v789, %v795
        %v797 = vcombine.low %v672, %v676
        %v799 = vunpack.c.l.s4 1983009808
        %v800 = vunpack.c.0.s8 %v799
        %v801 = vlaneseq
        %v802 = vshrl.u32 %v801, 7
        %v803 = vsub.s32 %v800, %v802
        %v804 = vrot.slane %v797, %v803
        %v805 = vcombine.low %v680, %v684
        %v807 = vunpack.c.l.s4 1983009808
        %v808 = vunpack.c.0.s8 %v807
        %v809 = vlaneseq
        %v810 = vshrl.u32 %v809, 7
        %v811 = vsub.s32 %v808, %v810
        %v812 = vrot.slane %v805, %v811
        %v813 = vcombine.low %v688, %v692
        %v815 = vunpack.c.l.s4 1983009808
        %v816 = vunpack.c.0.s8 %v815
        %v817 = vlaneseq
        %v818 = vshrl.u32 %v817, 7
        %v819 = vsub.s32 %v816, %v818
        %v820 = vrot.slane %v813, %v819
        %v821 = vcombine.low %v696, %v700
        %v823 = vunpack.c.l.s4 1983009808
        %v824 = vunpack.c.0.s8 %v823
        %v825 = vlaneseq
        %v826 = vshrl.u32 %v825, 7
        %v827 = vsub.s32 %v824, %v826
        %v828 = vrot.slane %v821, %v827
        %845 = vst [vmem:[%s221] sm:$0xf] %v708
        %846 = vst [vmem:[%s221 + $0x8] sm:$0xf] %v716
        %847 = vst [vmem:[%s221 + $0x10] sm:$0xf] %v724
        %848 = vst [vmem:[%s221 + $0x18] sm:$0xf] %v732
        %849 = vst [vmem:[%s221 + $0x20] sm:$0xf] %v740
        %850 = vst [vmem:[%s221 + $0x28] sm:$0xf] %v748
        %851 = vst [vmem:[%s221 + $0x30] sm:$0xf] %v756
        %852 = vst [vmem:[%s221 + $0x38] sm:$0xf] %v764
        %853 = vst [vmem:[%s221 + $0x40] sm:$0xf] %v772
        %854 = vst [vmem:[%s221 + $0x48] sm:$0xf] %v780
        %855 = vst [vmem:[%s221 + $0x50] sm:$0xf] %v788
        %856 = vst [vmem:[%s221 + $0x58] sm:$0xf] %v796
        %857 = vst [vmem:[%s221 + $0x60] sm:$0xf] %v804
        %858 = vst [vmem:[%s221 + $0x68] sm:$0xf] %v812
        %859 = vst [vmem:[%s221 + $0x70] sm:$0xf] %v820
        %860 = vst [vmem:[%s221 + $0x78] sm:$0xf] %v828
        %v861 = vld [vmem:[%s197 + $0x8] sm:$0xff]
        %v862 = vld [vmem:[%s197 + $0x18] sm:$0xff]
        %v863 = vld [vmem:[#allocation5] sm:$0xff]
        %v864 = vld [vmem:[#allocation5 + $0x8] sm:$0xff]
        %v865 = vld [vmem:[#allocation5 + $0x10] sm:$0xff]
        %v866 = vld [vmem:[#allocation5 + $0x18] sm:$0xff]
        %v867 = vld [vmem:[#allocation5 + $0x20] sm:$0xff]
        %v868 = vld [vmem:[#allocation5 + $0x28] sm:$0xff]
        %v869 = vld [vmem:[#allocation5 + $0x30] sm:$0xff]
        %v870 = vld [vmem:[#allocation5 + $0x38] sm:$0xff]
        %v871 = vld [vmem:[#allocation5 + $0x40] sm:$0xff]
        %v872 = vld [vmem:[#allocation5 + $0x48] sm:$0xff]
        %v873 = vld [vmem:[#allocation5 + $0x50] sm:$0xff]
        %v874 = vld [vmem:[#allocation5 + $0x58] sm:$0xff]
        %v875 = vld [vmem:[#allocation5 + $0x60] sm:$0xff]
        %v876 = vld [vmem:[#allocation5 + $0x68] sm:$0xff]
        %v877 = vld [vmem:[#allocation5 + $0x70] sm:$0xff]
        %v878 = vld [vmem:[#allocation5 + $0x78] sm:$0xff]
        %v879 = vpack.c.bf16 %v862, %v861
        %v880 = vunpack.c.l.bf16 %v879
        %v881 = vunpack.c.h.bf16 %v879
        %v882 = vsub.f32 %v861, %v880
        %v883 = vsub.f32 %v862, %v881
        %v884 = vpack.c.bf16 %v883, %v882
        %v885 = vunpack.c.l.bf16 %v884
        %v886 = vunpack.c.h.bf16 %v884
        %v887 = vsub.f32 %v882, %v885
        %v888 = vsub.f32 %v883, %v886
        %v889 = vpack.c.bf16 %v888, %v887
        %v906 = vunpack.c.l.b16 %v863
        %v907 = vunpack.c.h.b16 %v863
        %v908 = vunpack.c.l.b16 %v864
        %v909 = vunpack.c.h.b16 %v864
        %v910 = vunpack.c.l.b16 %v865
        %v911 = vunpack.c.h.b16 %v865
        %v912 = vunpack.c.l.b16 %v866
        %v913 = vunpack.c.h.b16 %v866
        %v914 = vunpack.c.l.b16 %v867
        %v915 = vunpack.c.h.b16 %v867
        %v916 = vunpack.c.l.b16 %v868
        %v917 = vunpack.c.h.b16 %v868
        %v918 = vunpack.c.l.b16 %v869
        %v919 = vunpack.c.h.b16 %v869
        %v920 = vunpack.c.l.b16 %v870
        %v921 = vunpack.c.h.b16 %v870
        %v922 = vunpack.c.l.b16 %v871
        %v923 = vunpack.c.h.b16 %v871
        %v924 = vunpack.c.l.b16 %v872
        %v925 = vunpack.c.h.b16 %v872
        %v926 = vunpack.c.l.b16 %v873
        %v927 = vunpack.c.h.b16 %v873
        %v928 = vunpack.c.l.b16 %v874
        %v929 = vunpack.c.h.b16 %v874
        %v930 = vunpack.c.l.b16 %v875
        %v931 = vunpack.c.h.b16 %v875
        %v932 = vunpack.c.l.b16 %v876
        %v933 = vunpack.c.h.b16 %v876
        %v934 = vunpack.c.l.b16 %v877
        %v935 = vunpack.c.h.b16 %v877
        %v936 = vunpack.c.l.b16 %v878
        %v937 = vunpack.c.h.b16 %v878
        %v938 = vpack.c.b16 %v908, %v906
        %v939 = vpack.c.b16 %v909, %v907
        %v940 = vpack.c.b16 %v912, %v910
        %v941 = vpack.c.b16 %v913, %v911
        %v942 = vpack.c.b16 %v916, %v914
        %v943 = vpack.c.b16 %v917, %v915
        %v944 = vpack.c.b16 %v920, %v918
        %v945 = vpack.c.b16 %v921, %v919
        %v946 = vpack.c.b16 %v924, %v922
        %v947 = vpack.c.b16 %v925, %v923
        %v948 = vpack.c.b16 %v928, %v926
        %v949 = vpack.c.b16 %v929, %v927
        %v950 = vpack.c.b16 %v932, %v930
        %v951 = vpack.c.b16 %v933, %v931
        %v952 = vpack.c.b16 %v936, %v934
        %v953 = vpack.c.b16 %v937, %v935
        %970 = vmatprep.subr.bf16.mxu0 %v939
        %971 = vmatpush1.bf16.msra.mxu0 %v938
        %972 = vmatprep.subr.bf16.mxu0 %v941
        %973 = vmatpush1.bf16.msra.mxu0 %v940
        %974 = vmatprep.subr.bf16.mxu0 %v943
        %975 = vmatpush1.bf16.msra.mxu0 %v942
        %976 = vmatprep.subr.bf16.mxu0 %v945
        %977 = vmatpush1.bf16.msra.mxu0 %v944
        %978 = vmatprep.subr.bf16.mxu0 %v947
        %979 = vmatpush1.bf16.msra.mxu0 %v946
        %980 = vmatprep.subr.bf16.mxu0 %v949
        %981 = vmatpush1.bf16.msra.mxu0 %v948
        %982 = vmatprep.subr.bf16.mxu0 %v951
        %983 = vmatpush1.bf16.msra.mxu0 %v950
        %984 = vmatprep.subr.bf16.mxu0 %v953
        %985 = vmatpush1.bf16.msra.mxu0 %v952
        %986 = vmatprep.subr.bf16.mxu0 0
        %987 = vmatpush1.bf16.msra.mxu0 0
        %988 = vmatprep.subr.bf16.mxu0 0
        %989 = vmatpush1.bf16.msra.mxu0 0
        %990 = vmatprep.subr.bf16.mxu0 0
        %991 = vmatpush1.bf16.msra.mxu0 0
        %992 = vmatprep.subr.bf16.mxu0 0
        %993 = vmatpush1.bf16.msra.mxu0 0
        %994 = vmatprep.subr.bf16.mxu0 0
        %995 = vmatpush1.bf16.msra.mxu0 0
        %996 = vmatprep.subr.bf16.mxu0 0
        %997 = vmatpush1.bf16.msra.mxu0 0
        %998 = vmatprep.subr.bf16.mxu0 0
        %999 = vmatpush1.bf16.msra.mxu0 0
        %1000 = vmatprep.subr.bf16.mxu0 0
        %1001 = vmatpush1.bf16.msra.mxu0 0
        %1002 = vmatprep.mubr.bf16.mxu0 0
        %1003 = vmatmul.mubr.bf16.gmra.mrb[0].mxu0 %v884
        %v1004 = vpop.f32.mrb[0].mxu0
        %v1005 = vadd.f32 0.0, %v1004
        %v1006 = vpop.f32.mrb[0].mxu0
        %v1007 = vadd.f32 0.0, %v1006
        %v1008 = vpop.f32.mrb[0].mxu0
        %v1009 = vadd.f32 0.0, %v1008
        %v1010 = vpop.f32.mrb[0].mxu0
        %v1011 = vadd.f32 0.0, %v1010
        %1012 = vdwg.mxu0
        %1013 = vmatprep.subr.bf16.mxu0 %v939
        %1014 = vmatpush1.bf16.msra.mxu0 %v938
        %1015 = vmatprep.subr.bf16.mxu0 %v941
        %1016 = vmatpush1.bf16.msra.mxu0 %v940
        %1017 = vmatprep.subr.bf16.mxu0 %v943
        %1018 = vmatpush1.bf16.msra.mxu0 %v942
        %1019 = vmatprep.subr.bf16.mxu0 %v945
        %1020 = vmatpush1.bf16.msra.mxu0 %v944
        %1021 = vmatprep.subr.bf16.mxu0 %v947
        %1022 = vmatpush1.bf16.msra.mxu0 %v946
        %1023 = vmatprep.subr.bf16.mxu0 %v949
        %1024 = vmatpush1.bf16.msra.mxu0 %v948
        %1025 = vmatprep.subr.bf16.mxu0 %v951
        %1026 = vmatpush1.bf16.msra.mxu0 %v950
        %1027 = vmatprep.subr.bf16.mxu0 %v953
        %1028 = vmatpush1.bf16.msra.mxu0 %v952
        %1029 = vmatprep.subr.bf16.mxu0 0
        %1030 = vmatpush1.bf16.msra.mxu0 0
        %1031 = vmatprep.subr.bf16.mxu0 0
        %1032 = vmatpush1.bf16.msra.mxu0 0
        %1033 = vmatprep.subr.bf16.mxu0 0
        %1034 = vmatpush1.bf16.msra.mxu0 0
        %1035 = vmatprep.subr.bf16.mxu0 0
        %1036 = vmatpush1.bf16.msra.mxu0 0
        %1037 = vmatprep.subr.bf16.mxu0 0
        %1038 = vmatpush1.bf16.msra.mxu0 0
        %1039 = vmatprep.subr.bf16.mxu0 0
        %1040 = vmatpush1.bf16.msra.mxu0 0
        %1041 = vmatprep.subr.bf16.mxu0 0
        %1042 = vmatpush1.bf16.msra.mxu0 0
        %1043 = vmatprep.subr.bf16.mxu0 0
        %1044 = vmatpush1.bf16.msra.mxu0 0
        %1045 = vmatprep.mubr.bf16.mxu0 0
        %1046 = vmatmul.mubr.bf16.gmra.mrb[0].mxu0 %v879
        %v1047 = vpop.f32.mrb[0].mxu0
        %v1048 = vadd.f32 %v1005, %v1047
        %v1049 = vpop.f32.mrb[0].mxu0
        %v1050 = vadd.f32 %v1007, %v1049
        %v1051 = vpop.f32.mrb[0].mxu0
        %v1052 = vadd.f32 %v1009, %v1051
        %v1053 = vpop.f32.mrb[0].mxu0
        %v1054 = vadd.f32 %v1011, %v1053
        %1055 = vdwg.mxu0
        %1056 = vmatprep.subr.bf16.mxu0 %v939
        %1057 = vmatpush1.bf16.msra.mxu0 %v938
        %1058 = vmatprep.subr.bf16.mxu0 %v941
        %1059 = vmatpush1.bf16.msra.mxu0 %v940
        %1060 = vmatprep.subr.bf16.mxu0 %v943
        %1061 = vmatpush1.bf16.msra.mxu0 %v942
        %1062 = vmatprep.subr.bf16.mxu0 %v945
        %1063 = vmatpush1.bf16.msra.mxu0 %v944
        %1064 = vmatprep.subr.bf16.mxu0 %v947
        %1065 = vmatpush1.bf16.msra.mxu0 %v946
        %1066 = vmatprep.subr.bf16.mxu0 %v949
        %1067 = vmatpush1.bf16.msra.mxu0 %v948
        %1068 = vmatprep.subr.bf16.mxu0 %v951
        %1069 = vmatpush1.bf16.msra.mxu0 %v950
        %1070 = vmatprep.subr.bf16.mxu0 %v953
        %1071 = vmatpush1.bf16.msra.mxu0 %v952
        %1072 = vmatprep.subr.bf16.mxu0 0
        %1073 = vmatpush1.bf16.msra.mxu0 0
        %1074 = vmatprep.subr.bf16.mxu0 0
        %1075 = vmatpush1.bf16.msra.mxu0 0
        %1076 = vmatprep.subr.bf16.mxu0 0
        %1077 = vmatpush1.bf16.msra.mxu0 0
        %1078 = vmatprep.subr.bf16.mxu0 0
        %1079 = vmatpush1.bf16.msra.mxu0 0
        %1080 = vmatprep.subr.bf16.mxu0 0
        %1081 = vmatpush1.bf16.msra.mxu0 0
        %1082 = vmatprep.subr.bf16.mxu0 0
        %1083 = vmatpush1.bf16.msra.mxu0 0
        %1084 = vmatprep.subr.bf16.mxu0 0
        %1085 = vmatpush1.bf16.msra.mxu0 0
        %1086 = vmatprep.subr.bf16.mxu0 0
        %1087 = vmatpush1.bf16.msra.mxu0 0
        %1088 = vmatprep.mubr.bf16.mxu0 0
        %1089 = vmatmul.mubr.bf16.gmra.mrb[0].mxu0 %v889
        %v1090 = vpop.f32.mrb[0].mxu0
        %v1091 = vadd.f32 0.0, %v1090
        %v1092 = vpop.f32.mrb[0].mxu0
        %v1093 = vadd.f32 0.0, %v1092
        %v1094 = vpop.f32.mrb[0].mxu0
        %v1095 = vadd.f32 0.0, %v1094
        %v1096 = vpop.f32.mrb[0].mxu0
        %v1097 = vadd.f32 0.0, %v1096
        %1098 = vdwg.mxu0
        %v1099 = vadd.f32 %v1048, %v1091
        %v1100 = vadd.f32 %v1050, %v1093
        %v1101 = vadd.f32 %v1052, %v1095
        %v1102 = vadd.f32 %v1054, %v1097
        %v1107 = vcombine.low %v1099, %v1100
        %v1108 = vcombine.high %v1099, %v1100
        %v1110 = vunpack.c.l.s4 1966171168
        %v1111 = vunpack.c.0.s8 %v1110
        %v1112 = vlaneseq
        %v1113 = vshrl.u32 %v1112, 7
        %v1114 = vsub.s32 %v1111, %v1113
        %v1115 = vrot.slane %v1107, %v1114
        %v1117 = vunpack.c.l.s4 1966171168
        %v1118 = vunpack.c.0.s8 %v1117
        %v1119 = vlaneseq
        %v1120 = vshrl.u32 %v1119, 7
        %v1121 = vsub.s32 %v1118, %v1120
        %v1122 = vrot.slane %v1108, %v1121
        %v1123 = vcombine.high %v1115, %v1115
        %v1124 = vcombine.high %v1122, %v1122
        %v1126 = vunpack.c.l.s4 1966171168
        %v1127 = vunpack.c.0.s8 %v1126
        %v1128 = vlaneseq
        %v1129 = vshrl.u32 %v1128, 7
        %v1130 = vsub.s32 %v1127, %v1129
        %v1131 = vrot.slane %v1115, %v1130
        %v1133 = vunpack.c.l.s4 1966171168
        %v1134 = vunpack.c.0.s8 %v1133
        %v1135 = vlaneseq
        %v1136 = vshrl.u32 %v1135, 7
        %v1137 = vsub.s32 %v1134, %v1136
        %v1138 = vrot.slane %v1122, %v1137
        %v1140 = vunpack.c.l.s4 1966171168
        %v1141 = vunpack.c.0.s8 %v1140
        %v1142 = vlaneseq
        %v1143 = vshrl.u32 %v1142, 7
        %v1144 = vsub.s32 %v1141, %v1143
        %v1145 = vrot.slane %v1123, %v1144
        %v1147 = vunpack.c.l.s4 1966171168
        %v1148 = vunpack.c.0.s8 %v1147
        %v1149 = vlaneseq
        %v1150 = vshrl.u32 %v1149, 7
        %v1151 = vsub.s32 %v1148, %v1150
        %v1152 = vrot.slane %v1124, %v1151
        %v1153 = vcombine.high %v1131, %v1131
        %v1154 = vcombine.high %v1138, %v1138
        %v1155 = vcombine.high %v1145, %v1145
        %v1156 = vcombine.high %v1152, %v1152
        %v1157 = vcombine.low %v1101, %v1102
        %v1158 = vcombine.high %v1101, %v1102
        %v1160 = vunpack.c.l.s4 1966171168
        %v1161 = vunpack.c.0.s8 %v1160
        %v1162 = vlaneseq
        %v1163 = vshrl.u32 %v1162, 7
        %v1164 = vsub.s32 %v1161, %v1163
        %v1165 = vrot.slane %v1157, %v1164
        %v1167 = vunpack.c.l.s4 1966171168
        %v1168 = vunpack.c.0.s8 %v1167
        %v1169 = vlaneseq
        %v1170 = vshrl.u32 %v1169, 7
        %v1171 = vsub.s32 %v1168, %v1170
        %v1172 = vrot.slane %v1158, %v1171
        %v1173 = vcombine.high %v1165, %v1165
        %v1174 = vcombine.high %v1172, %v1172
        %v1176 = vunpack.c.l.s4 1966171168
        %v1177 = vunpack.c.0.s8 %v1176
        %v1178 = vlaneseq
        %v1179 = vshrl.u32 %v1178, 7
        %v1180 = vsub.s32 %v1177, %v1179
        %v1181 = vrot.slane %v1165, %v1180
        %v1183 = vunpack.c.l.s4 1966171168
        %v1184 = vunpack.c.0.s8 %v1183
        %v1185 = vlaneseq
        %v1186 = vshrl.u32 %v1185, 7
        %v1187 = vsub.s32 %v1184, %v1186
        %v1188 = vrot.slane %v1172, %v1187
        %v1190 = vunpack.c.l.s4 1966171168
        %v1191 = vunpack.c.0.s8 %v1190
        %v1192 = vlaneseq
        %v1193 = vshrl.u32 %v1192, 7
        %v1194 = vsub.s32 %v1191, %v1193
        %v1195 = vrot.slane %v1173, %v1194
        %v1197 = vunpack.c.l.s4 1966171168
        %v1198 = vunpack.c.0.s8 %v1197
        %v1199 = vlaneseq
        %v1200 = vshrl.u32 %v1199, 7
        %v1201 = vsub.s32 %v1198, %v1200
        %v1202 = vrot.slane %v1174, %v1201
        %v1203 = vcombine.high %v1181, %v1181
        %v1204 = vcombine.high %v1188, %v1188
        %v1205 = vcombine.high %v1195, %v1195
        %v1206 = vcombine.high %v1202, %v1202
        %v1207 = vlaneseq
        %v1208 = vshrl.u32 %v1207, 7
        %v1209 = vsub.s32 0, %v1208
        %v1210 = vrot.slane %v1131, %v1209
        %v1211 = vlaneseq
        %v1212 = vshrl.u32 %v1211, 7
        %v1213 = vsub.s32 1, %v1212
        %v1214 = vrot.slane %v1131, %v1213
        %v1215 = vlaneseq
        %v1216 = vshrl.u32 %v1215, 7
        %v1217 = vsub.s32 0, %v1216
        %v1218 = vrot.slane %v1145, %v1217
        %v1219 = vlaneseq
        %v1220 = vshrl.u32 %v1219, 7
        %v1221 = vsub.s32 1, %v1220
        %v1222 = vrot.slane %v1145, %v1221
        %v1223 = vlaneseq
        %v1224 = vshrl.u32 %v1223, 7
        %v1225 = vsub.s32 0, %v1224
        %v1226 = vrot.slane %v1153, %v1225
        %v1227 = vlaneseq
        %v1228 = vshrl.u32 %v1227, 7
        %v1229 = vsub.s32 1, %v1228
        %v1230 = vrot.slane %v1153, %v1229
        %v1231 = vlaneseq
        %v1232 = vshrl.u32 %v1231, 7
        %v1233 = vsub.s32 0, %v1232
        %v1234 = vrot.slane %v1155, %v1233
        %v1235 = vlaneseq
        %v1236 = vshrl.u32 %v1235, 7
        %v1237 = vsub.s32 1, %v1236
        %v1238 = vrot.slane %v1155, %v1237
        %v1239 = vlaneseq
        %v1240 = vshrl.u32 %v1239, 7
        %v1241 = vsub.s32 0, %v1240
        %v1242 = vrot.slane %v1138, %v1241
        %v1243 = vlaneseq
        %v1244 = vshrl.u32 %v1243, 7
        %v1245 = vsub.s32 1, %v1244
        %v1246 = vrot.slane %v1138, %v1245
        %v1247 = vlaneseq
        %v1248 = vshrl.u32 %v1247, 7
        %v1249 = vsub.s32 0, %v1248
        %v1250 = vrot.slane %v1152, %v1249
        %v1251 = vlaneseq
        %v1252 = vshrl.u32 %v1251, 7
        %v1253 = vsub.s32 1, %v1252
        %v1254 = vrot.slane %v1152, %v1253
        %v1255 = vlaneseq
        %v1256 = vshrl.u32 %v1255, 7
        %v1257 = vsub.s32 0, %v1256
        %v1258 = vrot.slane %v1154, %v1257
        %v1259 = vlaneseq
        %v1260 = vshrl.u32 %v1259, 7
        %v1261 = vsub.s32 1, %v1260
        %v1262 = vrot.slane %v1154, %v1261
        %v1263 = vlaneseq
        %v1264 = vshrl.u32 %v1263, 7
        %v1265 = vsub.s32 0, %v1264
        %v1266 = vrot.slane %v1156, %v1265
        %v1267 = vlaneseq
        %v1268 = vshrl.u32 %v1267, 7
        %v1269 = vsub.s32 1, %v1268
        %v1270 = vrot.slane %v1156, %v1269
        %v1271 = vlaneseq
        %v1272 = vshrl.u32 %v1271, 7
        %v1273 = vsub.s32 0, %v1272
        %v1274 = vrot.slane %v1181, %v1273
        %v1275 = vlaneseq
        %v1276 = vshrl.u32 %v1275, 7
        %v1277 = vsub.s32 1, %v1276
        %v1278 = vrot.slane %v1181, %v1277
        %v1279 = vlaneseq
        %v1280 = vshrl.u32 %v1279, 7
        %v1281 = vsub.s32 0, %v1280
        %v1282 = vrot.slane %v1195, %v1281
        %v1283 = vlaneseq
        %v1284 = vshrl.u32 %v1283, 7
        %v1285 = vsub.s32 1, %v1284
        %v1286 = vrot.slane %v1195, %v1285
        %v1287 = vlaneseq
        %v1288 = vshrl.u32 %v1287, 7
        %v1289 = vsub.s32 0, %v1288
        %v1290 = vrot.slane %v1203, %v1289
        %v1291 = vlaneseq
        %v1292 = vshrl.u32 %v1291, 7
        %v1293 = vsub.s32 1, %v1292
        %v1294 = vrot.slane %v1203, %v1293
        %v1295 = vlaneseq
        %v1296 = vshrl.u32 %v1295, 7
        %v1297 = vsub.s32 0, %v1296
        %v1298 = vrot.slane %v1205, %v1297
        %v1299 = vlaneseq
        %v1300 = vshrl.u32 %v1299, 7
        %v1301 = vsub.s32 1, %v1300
        %v1302 = vrot.slane %v1205, %v1301
        %v1303 = vlaneseq
        %v1304 = vshrl.u32 %v1303, 7
        %v1305 = vsub.s32 0, %v1304
        %v1306 = vrot.slane %v1188, %v1305
        %v1307 = vlaneseq
        %v1308 = vshrl.u32 %v1307, 7
        %v1309 = vsub.s32 1, %v1308
        %v1310 = vrot.slane %v1188, %v1309
        %v1311 = vlaneseq
        %v1312 = vshrl.u32 %v1311, 7
        %v1313 = vsub.s32 0, %v1312
        %v1314 = vrot.slane %v1202, %v1313
        %v1315 = vlaneseq
        %v1316 = vshrl.u32 %v1315, 7
        %v1317 = vsub.s32 1, %v1316
        %v1318 = vrot.slane %v1202, %v1317
        %v1319 = vlaneseq
        %v1320 = vshrl.u32 %v1319, 7
        %v1321 = vsub.s32 0, %v1320
        %v1322 = vrot.slane %v1204, %v1321
        %v1323 = vlaneseq
        %v1324 = vshrl.u32 %v1323, 7
        %v1325 = vsub.s32 1, %v1324
        %v1326 = vrot.slane %v1204, %v1325
        %v1327 = vlaneseq
        %v1328 = vshrl.u32 %v1327, 7
        %v1329 = vsub.s32 0, %v1328
        %v1330 = vrot.slane %v1206, %v1329
        %v1331 = vlaneseq
        %v1332 = vshrl.u32 %v1331, 7
        %v1333 = vsub.s32 1, %v1332
        %v1334 = vrot.slane %v1206, %v1333
        %v1335 = vcombine.low %v1210, %v1214
        %v1337 = vunpack.c.l.s4 1983009808
        %v1338 = vunpack.c.0.s8 %v1337
        %v1339 = vlaneseq
        %v1340 = vshrl.u32 %v1339, 7
        %v1341 = vsub.s32 %v1338, %v1340
        %v1342 = vrot.slane %v1335, %v1341
        %v1343 = vcombine.low %v1218, %v1222
        %v1345 = vunpack.c.l.s4 1983009808
        %v1346 = vunpack.c.0.s8 %v1345
        %v1347 = vlaneseq
        %v1348 = vshrl.u32 %v1347, 7
        %v1349 = vsub.s32 %v1346, %v1348
        %v1350 = vrot.slane %v1343, %v1349
        %v1351 = vcombine.low %v1226, %v1230
        %v1353 = vunpack.c.l.s4 1983009808
        %v1354 = vunpack.c.0.s8 %v1353
        %v1355 = vlaneseq
        %v1356 = vshrl.u32 %v1355, 7
        %v1357 = vsub.s32 %v1354, %v1356
        %v1358 = vrot.slane %v1351, %v1357
        %v1359 = vcombine.low %v1234, %v1238
        %v1361 = vunpack.c.l.s4 1983009808
        %v1362 = vunpack.c.0.s8 %v1361
        %v1363 = vlaneseq
        %v1364 = vshrl.u32 %v1363, 7
        %v1365 = vsub.s32 %v1362, %v1364
        %v1366 = vrot.slane %v1359, %v1365
        %v1367 = vcombine.low %v1242, %v1246
        %v1369 = vunpack.c.l.s4 1983009808
        %v1370 = vunpack.c.0.s8 %v1369
        %v1371 = vlaneseq
        %v1372 = vshrl.u32 %v1371, 7
        %v1373 = vsub.s32 %v1370, %v1372
        %v1374 = vrot.slane %v1367, %v1373
        %v1375 = vcombine.low %v1250, %v1254
        %v1377 = vunpack.c.l.s4 1983009808
        %v1378 = vunpack.c.0.s8 %v1377
        %v1379 = vlaneseq
        %v1380 = vshrl.u32 %v1379, 7
        %v1381 = vsub.s32 %v1378, %v1380
        %v1382 = vrot.slane %v1375, %v1381
        %v1383 = vcombine.low %v1258, %v1262
        %v1385 = vunpack.c.l.s4 1983009808
        %v1386 = vunpack.c.0.s8 %v1385
        %v1387 = vlaneseq
        %v1388 = vshrl.u32 %v1387, 7
        %v1389 = vsub.s32 %v1386, %v1388
        %v1390 = vrot.slane %v1383, %v1389
        %v1391 = vcombine.low %v1266, %v1270
        %v1393 = vunpack.c.l.s4 1983009808
        %v1394 = vunpack.c.0.s8 %v1393
        %v1395 = vlaneseq
        %v1396 = vshrl.u32 %v1395, 7
        %v1397 = vsub.s32 %v1394, %v1396
        %v1398 = vrot.slane %v1391, %v1397
        %v1399 = vcombine.low %v1274, %v1278
        %v1401 = vunpack.c.l.s4 1983009808
        %v1402 = vunpack.c.0.s8 %v1401
        %v1403 = vlaneseq
        %v1404 = vshrl.u32 %v1403, 7
        %v1405 = vsub.s32 %v1402, %v1404
        %v1406 = vrot.slane %v1399, %v1405
        %v1407 = vcombine.low %v1282, %v1286
        %v1409 = vunpack.c.l.s4 1983009808
        %v1410 = vunpack.c.0.s8 %v1409
        %v1411 = vlaneseq
        %v1412 = vshrl.u32 %v1411, 7
        %v1413 = vsub.s32 %v1410, %v1412
        %v1414 = vrot.slane %v1407, %v1413
        %v1415 = vcombine.low %v1290, %v1294
        %v1417 = vunpack.c.l.s4 1983009808
        %v1418 = vunpack.c.0.s8 %v1417
        %v1419 = vlaneseq
        %v1420 = vshrl.u32 %v1419, 7
        %v1421 = vsub.s32 %v1418, %v1420
        %v1422 = vrot.slane %v1415, %v1421
        %v1423 = vcombine.low %v1298, %v1302
        %v1425 = vunpack.c.l.s4 1983009808
        %v1426 = vunpack.c.0.s8 %v1425
        %v1427 = vlaneseq
        %v1428 = vshrl.u32 %v1427, 7
        %v1429 = vsub.s32 %v1426, %v1428
        %v1430 = vrot.slane %v1423, %v1429
        %v1431 = vcombine.low %v1306, %v1310
        %v1433 = vunpack.c.l.s4 1983009808
        %v1434 = vunpack.c.0.s8 %v1433
        %v1435 = vlaneseq
        %v1436 = vshrl.u32 %v1435, 7
        %v1437 = vsub.s32 %v1434, %v1436
        %v1438 = vrot.slane %v1431, %v1437
        %v1439 = vcombine.low %v1314, %v1318
        %v1441 = vunpack.c.l.s4 1983009808
        %v1442 = vunpack.c.0.s8 %v1441
        %v1443 = vlaneseq
        %v1444 = vshrl.u32 %v1443, 7
        %v1445 = vsub.s32 %v1442, %v1444
        %v1446 = vrot.slane %v1439, %v1445
        %v1447 = vcombine.low %v1322, %v1326
        %v1449 = vunpack.c.l.s4 1983009808
        %v1450 = vunpack.c.0.s8 %v1449
        %v1451 = vlaneseq
        %v1452 = vshrl.u32 %v1451, 7
        %v1453 = vsub.s32 %v1450, %v1452
        %v1454 = vrot.slane %v1447, %v1453
        %v1455 = vcombine.low %v1330, %v1334
        %v1457 = vunpack.c.l.s4 1983009808
        %v1458 = vunpack.c.0.s8 %v1457
        %v1459 = vlaneseq
        %v1460 = vshrl.u32 %v1459, 7
        %v1461 = vsub.s32 %v1458, %v1460
        %v1462 = vrot.slane %v1455, %v1461
        %1479 = vst [vmem:[%s221 + $0x4] sm:$0xf] %v1342
        %1480 = vst [vmem:[%s221 + $0xc] sm:$0xf] %v1350
        %1481 = vst [vmem:[%s221 + $0x14] sm:$0xf] %v1358
        %1482 = vst [vmem:[%s221 + $0x1c] sm:$0xf] %v1366
        %1483 = vst [vmem:[%s221 + $0x24] sm:$0xf] %v1374
        %1484 = vst [vmem:[%s221 + $0x2c] sm:$0xf] %v1382
        %1485 = vst [vmem:[%s221 + $0x34] sm:$0xf] %v1390
        %1486 = vst [vmem:[%s221 + $0x3c] sm:$0xf] %v1398
        %1487 = vst [vmem:[%s221 + $0x44] sm:$0xf] %v1406
        %1488 = vst [vmem:[%s221 + $0x4c] sm:$0xf] %v1414
        %1489 = vst [vmem:[%s221 + $0x54] sm:$0xf] %v1422
        %1490 = vst [vmem:[%s221 + $0x5c] sm:$0xf] %v1430
        %1491 = vst [vmem:[%s221 + $0x64] sm:$0xf] %v1438
        %1492 = vst [vmem:[%s221 + $0x6c] sm:$0xf] %v1446
        %1493 = vst [vmem:[%s221 + $0x74] sm:$0xf] %v1454
        %1494 = vst [vmem:[%s221 + $0x7c] sm:$0xf] %v1462
        %s1495 = sand.u32 %s113, 1
        %s1496 = scalar_lea.sflag [#allocation4], %s1495
        %s1497 = sand.u32 %s113, 1
        %s1498 = smul.addr %s1497, 128
        %s1499 = scalar_lea.vmem [#allocation7], %s1498
        // Predicated region
        $region37: #{tpu_custom_call.1} parent=27 // pred_check
          %p1500 = pneg %p123
        $region38: #{tpu_custom_call.1} parent=27 // pred_check_branch
          %1502 = sbr.rel (%p1500) target = $region40
        $region39: #{tpu_custom_call.1} parent=27 // pred_region
          %s1503 = smul.u32 16, %s28
          %s1504 = smul.u32 4, %s29
          %s1506 = ssub.s32 2048, 2048
          %1507 = vsyncadd %s1496, %s1506
          %s1508 = smul.addr %s1503, 4
          %s1509 = sadd.s32 %s1504, %s1508
          %s1510 = smul.addr %s27, 64
          %s1511 = sadd.s32 %s1509, %s1510
          %s1512 = smul.addr %s26, 256
          %s1513 = sadd.s32 %s1511, %s1512
          %s1514 = smul.addr %s1513, 32
          %s1515 = scalar_lea.hbm %s2, %s1514
          %s1516 = sshll.u32 %s1499, 4
          %s1517 = int_to_ptr.vmem [resolvable:$true] %s1516
          %1522 = dma.vmem_to_hbm [thread:$0]  %s1517, 2048, %s1515, %s1496, 128, 128, 8
        $region40: #{tpu_custom_call.1} parent=27 // pred_fallthru
          _
      $region28: #{tpu_custom_call.1} parent=5 // pred_fallthru
        _
      %p1523 = scmp.le.s32.totalorder 2, %s15
      // Predicated region
      $region41: #{tpu_custom_call.1} parent=5 // pred_check
        %p1524 = pneg %p1523
      $region42: #{tpu_custom_call.1} parent=5 // pred_check_branch
        %1526 = sbr.rel (%p1524) target = $region44
      $region43: #{tpu_custom_call.1} parent=5 // pred_region
        %s1527 = ssub.s32 %s15, 2
        // Predicated region
        $region45: #{tpu_custom_call.1} parent=43 // pred_check
          %p1528 = pneg %p129
        $region46: #{tpu_custom_call.1} parent=43 // pred_check_branch
          %1530 = sbr.rel (%p1528) target = $region48
        $region47: #{tpu_custom_call.1} parent=43 // pred_region
          %s1531 = sand.u32 %s114, 1
          %s1532 = scalar_lea.sflag [#allocation4], %s1531
          %s1533 = sand.u32 %s114, 1
          %s1534 = smul.addr %s1533, 128
          %s1535 = scalar_lea.vmem [#allocation7], %s1534
          %1536 = dma.done %s1532, 2048
        $region48: #{tpu_custom_call.1} parent=43 // pred_fallthru
          _
      $region44: #{tpu_custom_call.1} parent=5 // pred_fallthru
        _
    $region6: #{tpu_custom_call.1} parent=1 // loop_footer
      %s19 = sadd.s32 1, %s15
    $region7: #{tpu_custom_call.1} parent=1 // loop_footer_branch
      %14 = sbr.rel target = $region3
    $region8: #{tpu_custom_call.1} parent=1 // loop_exit
      _
    %1537 = vsyncpa [#allocation3], 1
    %s1538 = scalar_lea.sflag [#allocation3], 1
    %1539 = vsyncpa %s1538, 1
    %1540 = vsyncpa [#allocation6], 1
    %1541 = vsyncpa [#allocation4], 1
    %s1542 = scalar_lea.sflag [#allocation4], 1
    %1543 = vsyncpa %s1542, 1

</llo_original>
